<compile_context>
chip_gen: v6e
topology: v6e:2x2x1
jax: 0.10.0
libtpu: 0.0.40
codegen_flags: <defaults>
</compile_context>

<pallas_src>
import functools
import math

import jax
import jax.numpy as jnp
from jax.experimental import pallas as pl
from jax.experimental.pallas import tpu as pltpu

_SINGLE_PASS_MAX_KV = 2048


def _round_up(x, m):
    return m * -(-x // m)


def _cdiv(a, b):
    return -(-a // b)


# --------------------------- hardware / sizing helpers ---------------------------- #

def _vmem_capacity_bytes():
    """Physical VMEM per core (v5e/v6e 128 MiB, v7x 64 MiB); conservative fallback."""
    try:
        info = pltpu.get_tpu_info()
    except Exception:
        return 64 * 1024 * 1024
    for name in ("vmem_capacity_bytes", "vmem_size_bytes", "vmem_bytes"):
        val = getattr(info, name, None)
        if val:
            try:
                return int(val)
            except (TypeError, ValueError):
                pass
    return 64 * 1024 * 1024


def _vmem_per_bh_bytes(tq, tk, dq, d_pad, in_itemsize, out_itemsize, multi_pass):
    """Per-(batch*head)-slice VMEM estimate for one grid step.

    Counts double-buffered I/O windows, the in-kernel f32 logits (s, p) and pv
    intermediates, and the lane-tiled footprint of the (tq, 1) m/l statistics
    (a (tq, 1) f32 array still occupies full 128-lane vregs).
    """
    f32 = 4
    io = (2 * (tq * dq + dq * tk + tk * d_pad) * in_itemsize
          + 2 * tq * d_pad * out_itemsize)
    live = (2 * tq * tk + tq * d_pad) * f32           # s, p, pv
    live += 2 * tq * 128 * f32                        # m, l (values or scratch)
    if multi_pass:
        live += tq * d_pad * f32                      # resident f32 accumulator
    return io + live


def _pick_bh_block(bh, per_bh_bytes, budget_bytes, n_q_tiles):
    """Largest divisor of bh fitting the budget, preferring an even, >=2
    parallel-grid product so both v7x TensorCores get work."""
    divisors = [d for d in range(1, bh + 1) if bh % d == 0]
    feasible = [d for d in divisors if d * per_bh_bytes <= budget_bytes] or [1]

    def par(d):
        return (bh // d) * n_q_tiles

    even = [d for d in feasible if par(d) >= 2 and par(d) % 2 == 0]
    ge2 = [d for d in feasible if par(d) >= 2]
    pool = even or ge2 or feasible
    return max(pool)


# ----------------------------- Pallas attention kernels ---------------------------- #

def _sdpa_single_pass_kernel(q_ref, kt_ref, v_ref, o_ref, *, scale):
    # Whole KV range resident in one tile: plain softmax, no online rescale.
    # Ragged-Iq overhang rows (if any) compute on unspecified data, but every
    # op below is row-local and the overhang rows are never stored.
    s = jnp.einsum("bqd,bdk->bqk", q_ref[...], kt_ref[...],
                   preferred_element_type=jnp.float32)
    if scale != 1.0:
        s = s * scale
    m = jnp.max(s, axis=-1, keepdims=True)
    p = jnp.exp(s - m)
    l = jnp.sum(p, axis=-1, keepdims=True)
    pv = jnp.einsum("bqk,bkd->bqd", p.astype(v_ref.dtype), v_ref[...],
                    preferred_element_type=jnp.float32)
    o_ref[...] = (pv * pl.reciprocal(l, approx=True)).astype(o_ref.dtype)


def _flash_sdpa_kernel(q_ref, kt_ref, v_ref, o_ref, m_sc, l_sc, acc_sc, *, scale):
    # Flash-style online softmax.  KV tails are pre-padded wrapper-side (zeros +
    # a -1e30 bias feature column), so no in-kernel masking is needed.
    kv = pl.program_id(2)

    @pl.when(kv == 0)
    def _init():
        m_sc[...] = jnp.full(m_sc.shape, -jnp.inf, dtype=m_sc.dtype)
        l_sc[...] = jnp.zeros(l_sc.shape, l_sc.dtype)
        acc_sc[...] = jnp.zeros(acc_sc.shape, acc_sc.dtype)

    # Logits: bf16 operands, f32 MXU accumulation.  k arrives pre-transposed
    # (bh, D, items) so the contraction dim is the RHS sublane dim (no vxpose).
    s = jnp.einsum("bqd,bdk->bqk", q_ref[...], kt_ref[...],
                   preferred_element_type=jnp.float32)
    if scale != 1.0:
        s = s * scale

    m_prev = m_sc[...]
    m_new = jnp.maximum(m_prev, jnp.max(s, axis=-1, keepdims=True))
    alpha = jnp.exp(m_prev - m_new)
    p = jnp.exp(s - m_new)
    l_sc[...] = alpha * l_sc[...] + jnp.sum(p, axis=-1, keepdims=True)

    # v is padded to the full accumulator width -> unmasked full-lane update.
    pv = jnp.einsum("bqk,bkd->bqd", p.astype(v_ref.dtype), v_ref[...],
                    preferred_element_type=jnp.float32)
    acc_sc[...] = alpha * acc_sc[...] + pv
    m_sc[...] = m_new

    @pl.when(kv == pl.num_programs(2) - 1)
    def _finalize():
        inv_l = pl.reciprocal(l_sc[...], approx=True)   # EUP vrcp, nearly free
        o_ref[...] = (acc_sc[...] * inv_l).astype(o_ref.dtype)


def pallas_sdpa(q, k, v, *, scale=1.0, out_dtype=jnp.float32,
                single_pass_max_kv=_SINGLE_PASS_MAX_KV):
    """softmax(q @ k^T * scale) @ v as a Pallas TPU kernel.

    q: (..., Iq, Dqk); k: (..., Ik, Dqk); v: (..., Ik, Dv).
    Returns (..., Iq, d_pad) with d_pad = round_up(Dv, 128); columns past Dv are
    zero (caller slices the real channels back out).
    """
    *lead, Iq, Dqk = q.shape
    Ik = k.shape[-2]
    Dv = v.shape[-1]
    bh = 1
    for d in lead:
        bh *= d

    qf = q.reshape(bh, Iq, Dqk)
    kt = jnp.swapaxes(k.reshape(bh, Ik, Dqk), -1, -2)   # (bh, Dqk, Ik): lane-dense MXU RHS
    vf = v.reshape(bh, Ik, Dv)

    d_pad = _round_up(Dv, 128)                           # lane-dense value/acc/output width
    if d_pad != Dv:
        vf = jnp.pad(vf, ((0, 0), (0, 0), (0, d_pad - Dv)))

    in_itemsize = qf.dtype.itemsize
    out_itemsize = jnp.dtype(out_dtype).itemsize
    tq = Iq if Iq <= 256 else 256
    n_q_tiles = _cdiv(Iq, tq)
    # Ragged Iq tail: the overhang rows of the last q tile compute on unspecified
    # data; all kernel math is row-local and the overhang rows are never stored.

    vmem_cap = _vmem_capacity_bytes()
    # v5e/v6e (128 MiB): limit ~96 MiB, search budget 64 MiB.  v7x (64 MiB/core): 48/32.
    vmem_limit = max(32 * 1024 * 1024, min(int(0.75 * vmem_cap), 100 * 1024 * 1024))
    budget = max(24 * 1024 * 1024, min(vmem_cap // 2, 64 * 1024 * 1024))

    out_shape = jax.ShapeDtypeStruct((bh, Iq, d_pad), out_dtype)
    cost = pl.CostEstimate(
        flops=int(2 * bh * Iq * Ik * (Dqk + Dv)),
        transcendentals=int(bh * Iq * Ik),
        bytes_accessed=int((qf.size + kt.size + vf.size) * in_itemsize
                           + bh * Iq * d_pad * out_itemsize))

    single = (Ik <= single_pass_max_kv and
              _vmem_per_bh_bytes(tq, Ik, Dqk, d_pad, in_itemsize, out_itemsize, False)
              <= budget)

    if single:
        per_bh = _vmem_per_bh_bytes(tq, Ik, Dqk, d_pad, in_itemsize, out_itemsize, False)
        bhb = _pick_bh_block(bh, per_bh, budget, n_q_tiles)
        out = pl.pallas_call(
            functools.partial(_sdpa_single_pass_kernel, scale=float(scale)),
            out_shape=out_shape,
            grid=(bh // bhb, n_q_tiles),
            in_specs=[
                pl.BlockSpec((bhb, tq, Dqk), lambda b, qi: (b, qi, 0)),
                pl.BlockSpec((bhb, Dqk, Ik), lambda b, qi: (b, 0, 0)),
                pl.BlockSpec((bhb, Ik, d_pad), lambda b, qi: (b, 0, 0)),
            ],
            out_specs=pl.BlockSpec((bhb, tq, d_pad), lambda b, qi: (b, qi, 0)),
            compiler_params=pltpu.CompilerParams(
                dimension_semantics=("parallel", "parallel"),
                vmem_limit_bytes=vmem_limit),
            cost_estimate=cost,
        )(qf, kt, vf)
        return out.reshape(tuple(lead) + (Iq, d_pad))

    # Flash (online-softmax) path for long KV.  Pick a lane-aligned KV tile that
    # balances padded-KV waste against per-grid-step overhead.
    cands = [c for c in (2048, 1024, 512, 256)
             if _vmem_per_bh_bytes(tq, c, Dqk + 1, d_pad, in_itemsize,
                                   out_itemsize, True) <= budget] or [256]
    tk = min(cands, key=lambda c: (_round_up(Ik, c) + 64 * _cdiv(Ik, c), -c))
    ik_pad = _round_up(Ik, tk)

    dq = Dqk
    if ik_pad != Ik:
        # Ragged KV handled wrapper-side: zero-pad keys/values along items and add
        # one bias feature column (1 in q, 0 for real keys, -1e30 for pad keys) so
        # padded logits vanish under softmax without any per-step masking.
        kt = jnp.pad(kt, ((0, 0), (0, 0), (0, ik_pad - Ik)))
        bias = jnp.concatenate(
            [jnp.zeros((bh, 1, Ik), kt.dtype),
             jnp.full((bh, 1, ik_pad - Ik), -1e30, kt.dtype)], axis=-1)
        kt = jnp.concatenate([kt, bias], axis=1)
        qf = jnp.concatenate([qf, jnp.ones((bh, Iq, 1), qf.dtype)], axis=-1)
        vf = jnp.pad(vf, ((0, 0), (0, ik_pad - Ik), (0, 0)))
        dq = Dqk + 1

    per_bh = _vmem_per_bh_bytes(tq, tk, dq, d_pad, in_itemsize, out_itemsize, True)
    bhb = _pick_bh_block(bh, per_bh, budget, n_q_tiles)

    out = pl.pallas_call(
        functools.partial(_flash_sdpa_kernel, scale=float(scale)),
        out_shape=out_shape,
        grid=(bh // bhb, n_q_tiles, ik_pad // tk),
        in_specs=[
            pl.BlockSpec((bhb, tq, dq), lambda b, qi, ki: (b, qi, 0)),
            pl.BlockSpec((bhb, dq, tk), lambda b, qi, ki: (b, 0, ki)),
            pl.BlockSpec((bhb, tk, d_pad), lambda b, qi, ki: (b, ki, 0)),
        ],
        out_specs=pl.BlockSpec((bhb, tq, d_pad), lambda b, qi, ki: (b, qi, 0)),
        scratch_shapes=[
            pltpu.VMEM((bhb, tq, 1), jnp.float32),       # m (row max)
            pltpu.VMEM((bhb, tq, 1), jnp.float32),       # l (row sum)
            pltpu.VMEM((bhb, tq, d_pad), jnp.float32),   # f32 accumulator
        ],
        compiler_params=pltpu.CompilerParams(
            dimension_semantics=("parallel", "parallel", "arbitrary"),
            vmem_limit_bytes=vmem_limit),
        cost_estimate=cost,
    )(qf, kt, vf)
    return out.reshape(tuple(lead) + (Iq, d_pad))


def _ref_sdpa(q, k, v, *, scale=1.0):
    s = jnp.einsum("...qd,...kd->...qk", q, k, preferred_element_type=jnp.float32)
    s = s * scale
    a = jax.nn.softmax(s, axis=-1)
    return jnp.einsum("...qk,...kd->...qd", a, v, preferred_element_type=jnp.float32)


# ------------------------------- JAX glue (reshapes etc.) -------------------------- #

def to_nd(x, d):
    """Make x d-dimensional, flattening extra leading dims into the first dim."""
    return x.reshape((-1,) + (1,) * max(0, d - 1 - x.ndim) + x.shape[-(d - 1):])


def _take_inner_product_wo_tri(mv):
    # Static slices instead of a gather for indices (0, 2, 3, 4, 8, 9, 10).
    return jnp.concatenate([mv[..., 0:1], mv[..., 2:5], mv[..., 8:11]], axis=-1)


def _build_dist_vec(tri, basis, normalizer):
    # tri: (..., c, 4); basis: (4, 4, 5)
    tri_normed = tri * normalizer(tri[..., 3:4])
    vec = jnp.einsum("xyz,...x->...yz", basis, tri_normed)
    vec = jnp.einsum("...yz,...y->...z", vec, tri_normed)
    return vec


def geometric_attention_forward(q_mv, k_mv, v_mv, q_s, k_s, v_s, normalizer,
                                basis_q, basis_k, weights=None, attn_mask=None,
                                attn_fn=pallas_sdpa, compute_dtype=jnp.bfloat16):
    # The torch reference accepts attn_mask but never forwards it to SDPA.
    assert attn_mask is None, "attn_mask is not used by the reference SDPA call"
    out_dtype = q_mv.dtype

    bh_shape = q_mv.shape[:-3]
    q_mv = to_nd(q_mv, 5)
    k_mv = to_nd(k_mv, 5)
    v_mv = to_nd(v_mv, 5)
    q_s = to_nd(q_s, 4)
    k_s = to_nd(k_s, 4)
    v_s = to_nd(v_s, 4)

    num_mv_channels_v = v_mv.shape[-2]
    num_s_channels_v = v_s.shape[-1]
    num_mv_channels_qk = q_mv.shape[-2]
    num_s_channels_qk = q_s.shape[-1]

    q_tri = q_mv[..., 11:15]   # _TRIVECTOR_IDX as a static slice
    k_tri = k_mv[..., 11:15]
    q_dist = _build_dist_vec(q_tri, basis_q, normalizer)
    k_dist = _build_dist_vec(k_tri, basis_k, normalizer)
    if weights is not None:
        q_dist = q_dist * weights[..., None].astype(q_dist.dtype)

    num_channels_qk = num_mv_channels_qk * (7 + 5) + num_s_channels_qk
    # torch: pad q/k/v with zeros to ceil8(max(nc_qk, nc_v)), k *= sqrt(NC/nc_qk),
    # SDPA scale = 1/sqrt(NC).  Zero padding contributes nothing to the dot
    # products and the two scales combine to 1/sqrt(nc_qk), independent of NC, so
    # the scale is folded into q (in f32, before the bf16 cast) and no HBM-side
    # padding is materialized.
    scale = 1.0 / math.sqrt(num_channels_qk)

    def _pack_qk(mv, dist, s):
        a = _take_inner_product_wo_tri(mv).reshape(mv.shape[:-2] + (-1,))
        b = dist.reshape(dist.shape[:-2] + (-1,))
        return jnp.concatenate([a, b, s], axis=-1)

    q = _pack_qk(q_mv, q_dist, q_s) * scale
    k = _pack_qk(k_mv, k_dist, k_s)
    v = jnp.concatenate([v_mv.reshape(v_mv.shape[:-2] + (-1,)), v_s], axis=-1)

    # bf16 MXU operands (softmax statistics / accumulation stay f32 in the kernel).
    if compute_dtype is not None:
        q = q.astype(compute_dtype)
        k = k.astype(compute_dtype)
        v = v.astype(compute_dtype)

    # expand_pairwise(q, k, v, exclude_dims=(-2,)) is a no-op when the batch/head
    # dims already agree (as they do here).
    # TODO(synk): general broadcasting across mismatched leading dims is not handled.

    v_out = attn_fn(q, k, v, scale=1.0)   # (B, H, Iq, >= num_channels_v), f32

    v_out_mv = v_out[..., : num_mv_channels_v * 16]
    v_out_mv = v_out_mv.reshape(v_out_mv.shape[:-1] + (num_mv_channels_v, 16))
    v_out_s = v_out[..., num_mv_channels_v * 16: num_mv_channels_v * 16 + num_s_channels_v]

    v_out_mv = v_out_mv.reshape(bh_shape + v_out_mv.shape[-3:]).astype(out_dtype)
    v_out_s = v_out_s.reshape(bh_shape + v_out_s.shape[-2:]).astype(out_dtype)
    return v_out_mv, v_out_s


# ------------------------------------- demo ---------------------------------------- #

if __name__ == "__main__":
    key = jax.random.PRNGKey(0)
    ks = jax.random.split(key, 4)

    # __init__ parameters: bases of shape (4, 4, 5), deterministic synthetic init.
    basis_q = jax.random.normal(ks[2], (4, 4, 5), jnp.float32) * 0.1
    basis_k = jax.random.normal(ks[3], (4, 4, 5), jnp.float32) * 0.1

    # normalizer callable (same role as GATr's trivector normalizer).
    normalizer = lambda x: 1.0 / (jnp.abs(x) + 1e-3)

    def make_inputs(rng, batch, heads, items_out, items_in, mv_c, s_c):
        r = jax.random.split(rng, 6)
        q_mv = jax.random.normal(r[0], (batch, heads, items_out, mv_c, 16), jnp.float32)
        k_mv = jax.random.normal(r[1], (batch, heads, items_in, mv_c, 16), jnp.float32)
        v_mv = jax.random.normal(r[2], (batch, heads, items_in, mv_c, 16), jnp.float32)
        q_s = jax.random.normal(r[3], (batch, heads, items_out, s_c), jnp.float32)
        k_s = jax.random.normal(r[4], (batch, heads, items_in, s_c), jnp.float32)
        v_s = jax.random.normal(r[5], (batch, heads, items_in, s_c), jnp.float32)
        return q_mv, k_mv, v_mv, q_s, k_s, v_s

    # Case 1: small shapes -> single-pass kernel (whole KV resident, no online softmax).
    q_mv, k_mv, v_mv, q_s, k_s, v_s = make_inputs(ks[0], 2, 2, 8, 8, 2, 4)
    out_mv, out_s = geometric_attention_forward(
        q_mv, k_mv, v_mv, q_s, k_s, v_s, normalizer, basis_q, basis_k)
    out_mv, out_s = jax.block_until_ready((out_mv, out_s))
    ref_mv, ref_s = geometric_attention_forward(
        q_mv, k_mv, v_mv, q_s, k_s, v_s, normalizer, basis_q, basis_k,
        attn_fn=_ref_sdpa)
    assert out_mv.shape == (2, 2, 8, 2, 16) and out_s.shape == (2, 2, 8, 4)
    assert jnp.allclose(out_mv, ref_mv, atol=2e-2, rtol=2e-2)
    assert jnp.allclose(out_s, ref_s, atol=2e-2, rtol=2e-2)

    # Case 2: ragged Iq / Ik exercising the flash (online-softmax) path, the
    # wrapper-side KV padding + bias-column tail handling, and the q-tile overhang.
    q_mv, k_mv, v_mv, q_s, k_s, v_s = make_inputs(ks[1], 1, 2, 300, 600, 2, 4)
    flash_attn = functools.partial(pallas_sdpa, single_pass_max_kv=64)
    out_mv, out_s = geometric_attention_forward(
        q_mv, k_mv, v_mv, q_s, k_s, v_s, normalizer, basis_q, basis_k,
        attn_fn=flash_attn)
    out_mv, out_s = jax.block_until_ready((out_mv, out_s))
    ref_mv, ref_s = geometric_attention_forward(
        q_mv, k_mv, v_mv, q_s, k_s, v_s, normalizer, basis_q, basis_k,
        attn_fn=_ref_sdpa)
    assert out_mv.shape == (1, 2, 300, 2, 16) and out_s.shape == (1, 2, 300, 4)
    assert jnp.allclose(out_mv, ref_mv, atol=2e-2, rtol=2e-2)
    assert jnp.allclose(out_s, ref_s, atol=2e-2, rtol=2e-2)

    print("KERNEL_OK")
</pallas_src>

<mosaic_0001>
module attributes {stable_mosaic.version = 11 : i64} {
  func.func @_sdpa_single_pass_kernel(%arg0: i32, %arg1: i32, %arg2: memref<2x8x28xbf16, #tpu.memory_space<vmem>>, %arg3: memref<2x28x8xbf16, #tpu.memory_space<vmem>>, %arg4: memref<2x8x128xbf16, #tpu.memory_space<vmem>>, %arg5: memref<2x8x128xf32, #tpu.memory_space<vmem>>) attributes {dimension_semantics = [#tpu.dimension_semantics<parallel>, #tpu.dimension_semantics<parallel>], iteration_bounds = array<i64: 2, 1>, scalar_prefetch = 0 : i64, scratch_operands = 0 : i64, tpu.core_type = #tpu.core_type<tc>, window_params = [{transform_indices = @transform_0, window_bounds = array<i64: 2, 8, 28>}, {transform_indices = @transform_1, window_bounds = array<i64: 2, 28, 8>}, {transform_indices = @transform_2, window_bounds = array<i64: 2, 8, 128>}, {transform_indices = @transform_3, window_bounds = array<i64: 2, 8, 128>}]} {
    %c0 = arith.constant 0 : index
    %c0_0 = arith.constant 0 : index
    %c0_1 = arith.constant 0 : index
    %0 = vector.load %arg2[%c0, %c0_0, %c0_1] : memref<2x8x28xbf16, #tpu.memory_space<vmem>>, vector<2x8x28xbf16>
    %c0_2 = arith.constant 0 : index
    %c0_3 = arith.constant 0 : index
    %c0_4 = arith.constant 0 : index
    %1 = vector.load %arg3[%c0_2, %c0_3, %c0_4] : memref<2x28x8xbf16, #tpu.memory_space<vmem>>, vector<2x28x8xbf16>
    "tpu.trace_start"() <{level = 10 : i32, message = "bqd,bdk->bqk"}> : () -> ()
    %cst = arith.constant dense<0.000000e+00> : vector<2x8x8xf32>
    %2 = tpu.matmul %0, %1, %cst {dimension_numbers = #tpu.dot_dimension_numbers<[2], [1], [1], [2], [0, 0, 0, 1, 1, 2], [0], [0]>} : vector<2x8x28xbf16>, vector<2x28x8xbf16>, vector<2x8x8xf32> -> vector<2x8x8xf32>
    "tpu.trace_stop"() : () -> ()
    %cst_5 = arith.constant dense<0xFF800000> : vector<2x8xf32>
    %3 = vector.multi_reduction <maximumf>, %2, %cst_5 [2] : vector<2x8x8xf32> to vector<2x8xf32>
    %4 = vector.shape_cast %3 : vector<2x8xf32> to vector<2x8x1xf32>
    %5 = vector.broadcast %4 : vector<2x8x1xf32> to vector<2x8x8xf32>
    %6 = arith.subf %2, %5 : vector<2x8x8xf32>
    %7 = math.exp %6 : vector<2x8x8xf32>
    %cst_6 = arith.constant dense<0.000000e+00> : vector<2x8xf32>
    %8 = vector.multi_reduction <add>, %7, %cst_6 [2] : vector<2x8x8xf32> to vector<2x8xf32>
    %9 = vector.shape_cast %8 : vector<2x8xf32> to vector<2x8x1xf32>
    %10 = arith.truncf %7 : vector<2x8x8xf32> to vector<2x8x8xbf16>
    %c0_7 = arith.constant 0 : index
    %c0_8 = arith.constant 0 : index
    %c0_9 = arith.constant 0 : index
    %11 = vector.load %arg4[%c0_7, %c0_8, %c0_9] : memref<2x8x128xbf16, #tpu.memory_space<vmem>>, vector<2x8x128xbf16>
    "tpu.trace_start"() <{level = 10 : i32, message = "bqk,bkd->bqd"}> : () -> ()
    %cst_10 = arith.constant dense<0.000000e+00> : vector<2x8x128xf32>
    %12 = tpu.matmul %10, %11, %cst_10 {dimension_numbers = #tpu.dot_dimension_numbers<[2], [1], [1], [2], [0, 0, 0, 1, 1, 2], [0], [0]>} : vector<2x8x8xbf16>, vector<2x8x128xbf16>, vector<2x8x128xf32> -> vector<2x8x128xf32>
    "tpu.trace_stop"() : () -> ()
    %13 = tpu.reciprocal %9 {approx = true} : vector<2x8x1xf32> -> vector<2x8x1xf32>
    %14 = vector.broadcast %13 : vector<2x8x1xf32> to vector<2x8x128xf32>
    %15 = arith.mulf %12, %14 : vector<2x8x128xf32>
    %c0_11 = arith.constant 0 : index
    %c0_12 = arith.constant 0 : index
    %c0_13 = arith.constant 0 : index
    %16 = vector.load %arg5[%c0_11, %c0_12, %c0_13] : memref<2x8x128xf32, #tpu.memory_space<vmem>>, vector<2x8x128xf32>
    tpu.vector_store %arg5[%c0_11, %c0_12, %c0_13], %15 {strides = array<i32>} : memref<2x8x128xf32, #tpu.memory_space<vmem>>, vector<2x8x128xf32>,
    return
  }
  func.func @transform_0(%arg0: i32, %arg1: i32) -> (i32, i32, i32) {
    %c0_i32 = arith.constant 0 : i32
    %c0_i32_0 = arith.constant 0 : i32
    return %arg0, %arg1, %c0_i32 : i32, i32, i32
  }
  func.func @transform_1(%arg0: i32, %arg1: i32) -> (i32, i32, i32) {
    %c0_i32 = arith.constant 0 : i32
    %c0_i32_0 = arith.constant 0 : i32
    %c0_i32_1 = arith.constant 0 : i32
    return %arg0, %c0_i32, %c0_i32_0 : i32, i32, i32
  }
  func.func @transform_2(%arg0: i32, %arg1: i32) -> (i32, i32, i32) {
    %c0_i32 = arith.constant 0 : i32
    %c0_i32_0 = arith.constant 0 : i32
    %c0_i32_1 = arith.constant 0 : i32
    return %arg0, %c0_i32, %c0_i32_0 : i32, i32, i32
  }
  func.func @transform_3(%arg0: i32, %arg1: i32) -> (i32, i32, i32) {
    %c0_i32 = arith.constant 0 : i32
    %c0_i32_0 = arith.constant 0 : i32
    return %arg0, %arg1, %c0_i32 : i32, i32, i32
  }
}

</mosaic_0001>

<llo_original>
// kernel: tpu_custom_call.1
$region0: #{tpu_custom_call.1}
  #allocation0 [shape = 'u32[]', space=smem, size = 0x4, offset = 0x4, fixed_abs, tag = 'smem constant byte address 0x4 - core index']
  #allocation1 [shape = 'u32[144,128]{1,0:T(1,128)}', space=vmem, size = 0x12000, scoped, tag = 'internal scratch']
  %s0 = inlined_call_operand.vmem [shape: bf16[4,8,28], index: 0, kind: input, shape index: {}]
  %s1 = inlined_call_operand.vmem [shape: bf16[4,28,8], index: 1, kind: input, shape index: {}]
  %s2 = inlined_call_operand.vmem [shape: bf16[4,8,128], index: 2, kind: input, shape index: {}]
  %s3 = inlined_call_operand.hbm [shape: f32[4,8,128], index: 3, kind: output, shape index: {}]
  %s4 = sld [smem:[#allocation0]]
  $region45: #{tpu_custom_call.1} parent=0
    _
  %s6 = ssub.s32 1, %s4
  %s7 = scalar_select 0, %s6, %s4
  $region1: #{tpu_custom_call.1} parent=0
    #allocation2 [shape = 'u8[16384]{0}', space=vmem, size = 0x4000, scoped, tag = 'output window, operand 0']
    #allocation3 [shape = 's32[2]{0}', space=sflag, size = 0x8, scoped, tag = 'scoped memory for tpu_custom_call.1']
    %8 = vsyncpa [#allocation3], 0
    %s9 = scalar_lea.sflag [#allocation3], 1
    %10 = vsyncpa %s9, 0
    loop: start=0, step=1, limit=4
    $region2: #{tpu_custom_call.1} parent=1 // loop_pre_header
      _
    $region3: #{tpu_custom_call.1} parent=1 // loop_header
      %s12 = sphi 0, %s16
      %p13 = scmp.ge.s32.totalorder %s12, 4
      %s19 = sphi 0, %s31
      %s20 = sphi 0, %s27
      %s21 = sphi 0, %s19
      %s22 = sphi 0, %s20
      %s23 = sphi 0, %s21
      %s24 = sphi 0, %s22
      %s36 = sphi 0, %s38
      %s39 = sphi 0, %s36
      %s40 = sphi 0, %s39
      %s56 = sphi 0, %s40
      %s62 = sphi 0, %s64
      %s65 = sphi 0, %s62
      %s66 = sphi 0, %s65
      %s82 = sphi 0, %s66
      %s88 = sphi 0, %s90
      %s91 = sphi 0, %s88
      %s92 = sphi 0, %s91
      %s108 = sphi 0, %s92
      %s116 = sphi 0, %s118
      %s119 = sphi 0, %s116
      %s120 = sphi 0, %s119
      %s136 = sphi 0, %s120
    $region4: #{tpu_custom_call.1} parent=1 // loop_header_branch
      %15 = sbr.rel (%p13) target = $region8
    $region5: #{tpu_custom_call.1} parent=1 // loop_body
      %s17 = ssub.s32 %s12, 1
      %s18 = ssub.s32 %s12, 2
      %s25 = sadd.s32 1, %s20
      %p26 = scmp.ge.s32.totalorder %s25, 1
      %s27 = scalar_select %p26, 0, %s25
      %s28 = sadd.s32 1, %s19
      %s29 = scalar_select %p26, %s28, %s19
      %p30 = scmp.ge.s32.totalorder %s29, 2
      %s31 = scalar_select %p30, 0, %s29
      %s32 = ssub.s32 %s19, %s31
      %s33 = ssub.s32 %s20, %s27
      %s34 = sor.u32 %s32, %s33
      %p35 = scmp.eq.s32.totalorder %s34, 0
      %s37 = sadd.s32 %s36, 1
      %s38 = scalar_select %p35, %s36, %s37
      %p41 = pneg %p35
      %p42 = scmp.eq.s32.totalorder %s12, 1
      %p43 = por %p41, %p42
      %p44 = scmp.ne.s32.totalorder %s36, %s39
      %p45 = scmp.eq.s32.totalorder %s12, 0
      %p46 = por %p44, %p45
      %p47 = scmp.ne.s32.totalorder %s36, %s39
      %p48 = scmp.eq.s32.totalorder %s17, 1
      %p49 = por %p47, %p48
      %p50 = scmp.ne.s32.totalorder %s39, %s40
      %p51 = scmp.eq.s32.totalorder %s17, 0
      %p52 = por %p50, %p51
      %p53 = scmp.ne.s32.totalorder %s39, %s40
      %p54 = scmp.eq.s32.totalorder %s18, 1
      %p55 = por %p53, %p54
      %p57 = scmp.ne.s32.totalorder %s40, %s56
      %p58 = scmp.eq.s32.totalorder %s18, 0
      %p59 = por %p57, %p58
      %s60 = ssub.s32 %s19, %s31
      %p61 = scmp.eq.s32.totalorder %s60, 0
      %s63 = sadd.s32 %s62, 1
      %s64 = scalar_select %p61, %s62, %s63
      %p67 = pneg %p61
      %p68 = scmp.eq.s32.totalorder %s12, 1
      %p69 = por %p67, %p68
      %p70 = scmp.ne.s32.totalorder %s62, %s65
      %p71 = scmp.eq.s32.totalorder %s12, 0
      %p72 = por %p70, %p71
      %p73 = scmp.ne.s32.totalorder %s62, %s65
      %p74 = scmp.eq.s32.totalorder %s17, 1
      %p75 = por %p73, %p74
      %p76 = scmp.ne.s32.totalorder %s65, %s66
      %p77 = scmp.eq.s32.totalorder %s17, 0
      %p78 = por %p76, %p77
      %p79 = scmp.ne.s32.totalorder %s65, %s66
      %p80 = scmp.eq.s32.totalorder %s18, 1
      %p81 = por %p79, %p80
      %p83 = scmp.ne.s32.totalorder %s66, %s82
      %p84 = scmp.eq.s32.totalorder %s18, 0
      %p85 = por %p83, %p84
      %s86 = ssub.s32 %s19, %s31
      %p87 = scmp.eq.s32.totalorder %s86, 0
      %s89 = sadd.s32 %s88, 1
      %s90 = scalar_select %p87, %s88, %s89
      %p93 = pneg %p87
      %p94 = scmp.eq.s32.totalorder %s12, 1
      %p95 = por %p93, %p94
      %p96 = scmp.ne.s32.totalorder %s88, %s91
      %p97 = scmp.eq.s32.totalorder %s12, 0
      %p98 = por %p96, %p97
      %p99 = scmp.ne.s32.totalorder %s88, %s91
      %p100 = scmp.eq.s32.totalorder %s17, 1
      %p101 = por %p99, %p100
      %p102 = scmp.ne.s32.totalorder %s91, %s92
      %p103 = scmp.eq.s32.totalorder %s17, 0
      %p104 = por %p102, %p103
      %p105 = scmp.ne.s32.totalorder %s91, %s92
      %p106 = scmp.eq.s32.totalorder %s18, 1
      %p107 = por %p105, %p106
      %p109 = scmp.ne.s32.totalorder %s92, %s108
      %p110 = scmp.eq.s32.totalorder %s18, 0
      %p111 = por %p109, %p110
      %s112 = ssub.s32 %s19, %s31
      %s113 = ssub.s32 %s20, %s27
      %s114 = sor.u32 %s112, %s113
      %p115 = scmp.eq.s32.totalorder %s114, 0
      %s117 = sadd.s32 %s116, 1
      %s118 = scalar_select %p115, %s116, %s117
      %p121 = pneg %p115
      %p122 = scmp.eq.s32.totalorder %s12, 1
      %p123 = por %p121, %p122
      %p124 = scmp.ne.s32.totalorder %s116, %s119
      %p125 = scmp.eq.s32.totalorder %s12, 0
      %p126 = por %p124, %p125
      %p127 = scmp.ne.s32.totalorder %s116, %s119
      %p128 = scmp.eq.s32.totalorder %s17, 1
      %p129 = por %p127, %p128
      %p130 = scmp.ne.s32.totalorder %s119, %s120
      %p131 = scmp.eq.s32.totalorder %s17, 0
      %p132 = por %p130, %p131
      %p133 = scmp.ne.s32.totalorder %s119, %s120
      %p134 = scmp.eq.s32.totalorder %s18, 1
      %p135 = por %p133, %p134
      %p137 = scmp.ne.s32.totalorder %s120, %s136
      %p138 = scmp.eq.s32.totalorder %s18, 0
      %p139 = por %p137, %p138
      %p140 = scmp.le.s32.totalorder 1, %s12
      %p141 = scmp.lt.s32.totalorder %s12, 3
      %p142 = pnand %p140, %p141
      %p143 = pneg %p142
      // Predicated region
      $region9: #{tpu_custom_call.1} parent=5 // pred_check
        _
      $region10: #{tpu_custom_call.1} parent=5 // pred_check_branch
        %145 = sbr.rel (%p142) target = $region12
      $region11: #{tpu_custom_call.1} parent=5 // pred_region
        %s146 = ssub.s32 %s12, 1
      $region12: #{tpu_custom_call.1} parent=5 // pred_fallthru
        _
      %p147 = scmp.lt.s32.totalorder %s12, 2
      // Predicated region
      $region13: #{tpu_custom_call.1} parent=5 // pred_check
        %p148 = pneg %p147
      $region14: #{tpu_custom_call.1} parent=5 // pred_check_branch
        %150 = sbr.rel (%p148) target = $region16
      $region15: #{tpu_custom_call.1} parent=5 // pred_region
        // Predicated region
        $region17: #{tpu_custom_call.1} parent=15 // pred_check
          %p151 = pneg %p46
        $region18: #{tpu_custom_call.1} parent=15 // pred_check_branch
          %153 = sbr.rel (%p151) target = $region20
        $region19: #{tpu_custom_call.1} parent=15 // pred_region
          %s154 = smul.u32 2, %s19
          %p155 = scmp.lt.s32.totalorder %s154, 3
          %s156 = scalar_select %p155, %s154, 3
          %p157 = scmp.lt.s32.totalorder %s20, 0
          %s158 = scalar_select %p157, %s20, 0
          %s159 = sadd.s32 %s158, %s156
          %s160 = smul.addr %s159, 4
          %s161 = scalar_lea.vmem %s0, %s160
          %s162 = smul.u32 2, %s19
        $region20: #{tpu_custom_call.1} parent=15 // pred_fallthru
          _
        // Predicated region
        $region21: #{tpu_custom_call.1} parent=15 // pred_check
          %p163 = pneg %p72
        $region22: #{tpu_custom_call.1} parent=15 // pred_check_branch
          %165 = sbr.rel (%p163) target = $region24
        $region23: #{tpu_custom_call.1} parent=15 // pred_region
          %s166 = smul.u32 2, %s19
          %p167 = scmp.lt.s32.totalorder %s166, 3
          %s168 = scalar_select %p167, %s166, 3
          %s169 = smul.addr %s168, 4
          %s170 = smul.addr %s169, 4
          %s171 = scalar_lea.vmem %s1, %s170
          %s172 = smul.u32 2, %s19
        $region24: #{tpu_custom_call.1} parent=15 // pred_fallthru
          _
        // Predicated region
        $region25: #{tpu_custom_call.1} parent=15 // pred_check
          %p173 = pneg %p98
        $region26: #{tpu_custom_call.1} parent=15 // pred_check_branch
          %175 = sbr.rel (%p173) target = $region28
        $region27: #{tpu_custom_call.1} parent=15 // pred_region
          %s176 = smul.u32 2, %s19
          %p177 = scmp.lt.s32.totalorder %s176, 3
          %s178 = scalar_select %p177, %s176, 3
          %s179 = smul.addr %s178, 4
          %s180 = scalar_lea.vmem %s2, %s179
          %s181 = smul.u32 2, %s19
        $region28: #{tpu_custom_call.1} parent=15 // pred_fallthru
          _
      $region16: #{tpu_custom_call.1} parent=5 // pred_fallthru
        _
      %p182 = scmp.le.s32.totalorder 1, %s12
      %p183 = scmp.lt.s32.totalorder %s12, 3
      %p184 = pnand %p182, %p183
      %p185 = pneg %p184
      // Predicated region
      $region29: #{tpu_custom_call.1} parent=5 // pred_check
        _
      $region30: #{tpu_custom_call.1} parent=5 // pred_check_branch
        %187 = sbr.rel (%p184) target = $region32
      $region31: #{tpu_custom_call.1} parent=5 // pred_region
        %s188 = ssub.s32 %s12, 1
        %s189 = smul.u32 2, %s21
        %p190 = scmp.lt.s32.totalorder %s189, 3
        %s191 = scalar_select %p190, %s189, 3
        %p192 = scmp.lt.s32.totalorder %s22, 0
        %s193 = scalar_select %p192, %s22, 0
        %s194 = sadd.s32 %s193, %s191
        %s195 = smul.addr %s194, 4
        %s196 = scalar_lea.vmem %s0, %s195
        %p197 = pneg %p52
        %p198 = pneg %p49
        %s199 = smul.u32 2, %s21
        %p200 = scmp.lt.s32.totalorder %s199, 3
        %s201 = scalar_select %p200, %s199, 3
        %s202 = smul.addr %s201, 4
        %s203 = smul.addr %s202, 4
        %s204 = scalar_lea.vmem %s1, %s203
        %p205 = pneg %p78
        %p206 = pneg %p75
        %s207 = smul.u32 2, %s21
        %p208 = scmp.lt.s32.totalorder %s207, 3
        %s209 = scalar_select %p208, %s207, 3
        %s210 = smul.addr %s209, 4
        %s211 = scalar_lea.vmem %s2, %s210
        %p212 = pneg %p104
        %p213 = pneg %p101
        %p214 = pneg %p132
        %p215 = pneg %p129
        %s216 = sand.u32 %s119, 1
        %s217 = scalar_lea.sflag [#allocation3], %s216
        %s218 = sand.u32 %s119, 1
        %s219 = smul.addr %s218, 16
        %s220 = scalar_lea.vmem [#allocation2], %s219
        %s221 = smul.u32 2, %s21
        %p222 = scmp.lt.s32.totalorder %s221, 3
        %s223 = scalar_select %p222, %s221, 3
        %p224 = scmp.lt.s32.totalorder %s22, 0
        %s225 = scalar_select %p224, %s22, 0
        %s226 = sadd.s32 %s225, %s223
        %s227 = smul.addr %s226, 4
        %s228 = scalar_lea.vmem %s0, %s227
        %s229 = smul.u32 2, %s21
        %s230 = smul.u32 2, %s21
        %p231 = scmp.lt.s32.totalorder %s230, 3
        %s232 = scalar_select %p231, %s230, 3
        %s233 = smul.addr %s232, 4
        %s234 = smul.addr %s233, 4
        %s235 = scalar_lea.vmem %s1, %s234
        %s236 = smul.u32 2, %s21
        %s237 = smul.u32 2, %s21
        %p238 = scmp.lt.s32.totalorder %s237, 3
        %s239 = scalar_select %p238, %s237, 3
        %s240 = smul.addr %s239, 4
        %s241 = scalar_lea.vmem %s2, %s240
        %s242 = smul.u32 2, %s21
        %s243 = smul.u32 2, %s21
        %v245 = vld [vmem:[%s228] sm:$0xf]
        %v246 = vld [vmem:[%s228 + $0x4] sm:$0xf]
        %v247 = vld [vmem:[%s235] sm:$0xf]
        %v248 = vld [vmem:[%s235 + $0x4] sm:$0xf]
        %v249 = vld [vmem:[%s235 + $0x8] sm:$0xf]
        %v250 = vld [vmem:[%s235 + $0xc] sm:$0x3]
        %v251 = vld [vmem:[%s235 + $0x10] sm:$0xf]
        %v252 = vld [vmem:[%s235 + $0x14] sm:$0xf]
        %v253 = vld [vmem:[%s235 + $0x18] sm:$0xf]
        %v254 = vld [vmem:[%s235 + $0x1c] sm:$0x3]
        %v259 = vunpack.c.l.b16 %v247
        %v260 = vunpack.c.l.b16 %v248
        %v261 = vunpack.c.l.b16 %v249
        %v262 = vunpack.c.l.b16 %v250
        %v263 = vpack.c.b16 %v260, %v259
        %v264 = vpack.c.b16 %v262, %v261
        %vm266 = vcmask 228352
        %v268 = vsel %vm266, %v245, 0
        %vm270 = vcmask 1045504
        %v272 = vsel %vm270, %v264, 0
        %274 = vmatprep.subr.bf16.mxu0 0
        %275 = vmatpush1.bf16.msra.mxu0 0
        %276 = vmatprep.subr.bf16.mxu0 0
        %277 = vmatpush1.bf16.msra.mxu0 0
        %278 = vmatprep.subr.bf16.mxu0 0
        %279 = vmatpush1.bf16.msra.mxu0 0
        %280 = vmatprep.subr.bf16.mxu0 0
        %281 = vmatpush1.bf16.msra.mxu0 0
        %282 = vmatprep.subr.bf16.mxu0 0
        %283 = vmatpush1.bf16.msra.mxu0 0
        %284 = vmatprep.subr.bf16.mxu0 0
        %285 = vmatpush1.bf16.msra.mxu0 0
        %286 = vmatprep.subr.bf16.mxu0 0
        %287 = vmatpush1.bf16.msra.mxu0 %v272
        %288 = vmatprep.subr.bf16.mxu0 0
        %289 = vmatpush1.bf16.msra.mxu0 %v263
        %290 = vmatprep.subr.bf16.mxu0 0
        %291 = vmatpush2.bf16.msra.mxu0 0
        %292 = vmatprep.subr.bf16.mxu0 0
        %293 = vmatpush2.bf16.msra.mxu0 0
        %294 = vmatprep.subr.bf16.mxu0 0
        %295 = vmatpush2.bf16.msra.mxu0 0
        %296 = vmatprep.subr.bf16.mxu0 0
        %297 = vmatpush2.bf16.msra.mxu0 0
        %298 = vmatprep.subr.bf16.mxu0 0
        %299 = vmatpush2.bf16.msra.mxu0 0
        %300 = vmatprep.subr.bf16.mxu0 0
        %301 = vmatpush2.bf16.msra.mxu0 0
        %302 = vmatprep.subr.bf16.mxu0 0
        %303 = vmatpush2.bf16.msra.mxu0 0
        %304 = vmatprep.subr.bf16.mxu0 0
        %305 = vmatpush2.bf16.msra.mxu0 0
        %306 = vmatprep.mubr.bf16.mxu0 0
        %307 = vmatmul.mubr.bf16.gmra.mxu0 %v268
        %v308 = vpop.f32.mrf.mxu0
        %v309 = vadd.f32 0.0, %v308
        %v310 = vpop.f32.mrf.mxu0
        %v311 = vpop.f32.mrf.mxu0
        %v312 = vpop.f32.mrf.mxu0
        %313 = vdwg.mxu0
        %v318 = vunpack.c.l.b16 %v251
        %v319 = vunpack.c.l.b16 %v252
        %v320 = vunpack.c.l.b16 %v253
        %v321 = vunpack.c.l.b16 %v254
        %v322 = vpack.c.b16 %v319, %v318
        %v323 = vpack.c.b16 %v321, %v320
        %v326 = vsel %vm266, %v246, 0
        %v329 = vsel %vm270, %v323, 0
        %331 = vmatprep.subr.bf16.mxu0 0
        %332 = vmatpush1.bf16.msra.mxu0 0
        %333 = vmatprep.subr.bf16.mxu0 0
        %334 = vmatpush1.bf16.msra.mxu0 0
        %335 = vmatprep.subr.bf16.mxu0 0
        %336 = vmatpush1.bf16.msra.mxu0 0
        %337 = vmatprep.subr.bf16.mxu0 0
        %338 = vmatpush1.bf16.msra.mxu0 0
        %339 = vmatprep.subr.bf16.mxu0 0
        %340 = vmatpush1.bf16.msra.mxu0 0
        %341 = vmatprep.subr.bf16.mxu0 0
        %342 = vmatpush1.bf16.msra.mxu0 0
        %343 = vmatprep.subr.bf16.mxu0 0
        %344 = vmatpush1.bf16.msra.mxu0 %v329
        %345 = vmatprep.subr.bf16.mxu0 0
        %346 = vmatpush1.bf16.msra.mxu0 %v322
        %347 = vmatprep.subr.bf16.mxu0 0
        %348 = vmatpush2.bf16.msra.mxu0 0
        %349 = vmatprep.subr.bf16.mxu0 0
        %350 = vmatpush2.bf16.msra.mxu0 0
        %351 = vmatprep.subr.bf16.mxu0 0
        %352 = vmatpush2.bf16.msra.mxu0 0
        %353 = vmatprep.subr.bf16.mxu0 0
        %354 = vmatpush2.bf16.msra.mxu0 0
        %355 = vmatprep.subr.bf16.mxu0 0
        %356 = vmatpush2.bf16.msra.mxu0 0
        %357 = vmatprep.subr.bf16.mxu0 0
        %358 = vmatpush2.bf16.msra.mxu0 0
        %359 = vmatprep.subr.bf16.mxu0 0
        %360 = vmatpush2.bf16.msra.mxu0 0
        %361 = vmatprep.subr.bf16.mxu0 0
        %362 = vmatpush2.bf16.msra.mxu0 0
        %363 = vmatprep.mubr.bf16.mxu0 0
        %364 = vmatmul.mubr.bf16.gmra.mxu0 %v326
        %v365 = vpop.f32.mrf.mxu0
        %v366 = vadd.f32 0.0, %v365
        %v367 = vpop.f32.mrf.mxu0
        %v368 = vpop.f32.mrf.mxu0
        %v369 = vpop.f32.mrf.mxu0
        %370 = vdwg.mxu0
        %vm371 = vcmask 64512
        %v372 = vsel %vm371, %v309, -inf
        %373 = vmax.xlane.f32.xlu0 %v372
        %v374 = vpop.xlane.xlu0 %373
        %v375 = vsel %vm371, %v366, -inf
        %376 = vmax.xlane.f32.xlu0 %v375
        %v377 = vpop.xlane.xlu0 %376
        %v378 = vsub.f32 %v309, %v374
        %v379 = vsub.f32 %v366, %v377
        %v380 = vmul.f32 %v378, 1.442695
        %v381 = vpow.pop %v380
        %v382 = vmul.f32 %v379, 1.442695
        %v383 = vpow.pop %v382
        %v384 = vsel %vm371, %v381, 0.0
        %385 = vadd.xlane.f32.xlu0 %v384
        %v386 = vpop.xlane.xlu0 %385
        %v387 = vsel %vm371, %v383, 0.0
        %388 = vadd.xlane.f32.xlu0 %v387
        %v389 = vpop.xlane.xlu0 %388
        %v390 = vpack.c.bf16 %v381, %v381
        %v391 = vpack.c.bf16 %v383, %v383
        %v392 = vld [vmem:[%s241] sm:$0xf]
        %v393 = vld [vmem:[%s241 + $0x4] sm:$0xf]
        %v395 = vsel %vm371, %v390, 0
        %vm397 = vcmask 1043456
        %v399 = vsel %vm397, %v392, 0
        %401 = vmatprep.subr.bf16.mxu0 0
        %402 = vmatpush1.bf16.msra.mxu0 0
        %403 = vmatprep.subr.bf16.mxu0 0
        %404 = vmatpush1.bf16.msra.mxu0 0
        %405 = vmatprep.subr.bf16.mxu0 0
        %406 = vmatpush1.bf16.msra.mxu0 0
        %407 = vmatprep.subr.bf16.mxu0 0
        %408 = vmatpush1.bf16.msra.mxu0 0
        %409 = vmatprep.subr.bf16.mxu0 0
        %410 = vmatpush1.bf16.msra.mxu0 0
        %411 = vmatprep.subr.bf16.mxu0 0
        %412 = vmatpush1.bf16.msra.mxu0 0
        %413 = vmatprep.subr.bf16.mxu0 0
        %414 = vmatpush1.bf16.msra.mxu0 0
        %415 = vmatprep.subr.bf16.mxu0 0
        %416 = vmatpush1.bf16.msra.mxu0 %v399
        %417 = vmatprep.subr.bf16.mxu0 0
        %418 = vmatpush2.bf16.msra.mxu0 0
        %419 = vmatprep.subr.bf16.mxu0 0
        %420 = vmatpush2.bf16.msra.mxu0 0
        %421 = vmatprep.subr.bf16.mxu0 0
        %422 = vmatpush2.bf16.msra.mxu0 0
        %423 = vmatprep.subr.bf16.mxu0 0
        %424 = vmatpush2.bf16.msra.mxu0 0
        %425 = vmatprep.subr.bf16.mxu0 0
        %426 = vmatpush2.bf16.msra.mxu0 0
        %427 = vmatprep.subr.bf16.mxu0 0
        %428 = vmatpush2.bf16.msra.mxu0 0
        %429 = vmatprep.subr.bf16.mxu0 0
        %430 = vmatpush2.bf16.msra.mxu0 0
        %431 = vmatprep.subr.bf16.mxu0 0
        %432 = vmatpush2.bf16.msra.mxu0 0
        %433 = vmatprep.mubr.bf16.mxu0 0
        %434 = vmatmul.mubr.bf16.gmra.mxu0 %v395
        %v435 = vpop.f32.mrf.mxu0
        %v436 = vadd.f32 0.0, %v435
        %v437 = vpop.f32.mrf.mxu0
        %v438 = vpop.f32.mrf.mxu0
        %v439 = vpop.f32.mrf.mxu0
        %440 = vdwg.mxu0
        %v442 = vsel %vm371, %v391, 0
        %v445 = vsel %vm397, %v393, 0
        %447 = vmatprep.subr.bf16.mxu0 0
        %448 = vmatpush1.bf16.msra.mxu0 0
        %449 = vmatprep.subr.bf16.mxu0 0
        %450 = vmatpush1.bf16.msra.mxu0 0
        %451 = vmatprep.subr.bf16.mxu0 0
        %452 = vmatpush1.bf16.msra.mxu0 0
        %453 = vmatprep.subr.bf16.mxu0 0
        %454 = vmatpush1.bf16.msra.mxu0 0
        %455 = vmatprep.subr.bf16.mxu0 0
        %456 = vmatpush1.bf16.msra.mxu0 0
        %457 = vmatprep.subr.bf16.mxu0 0
        %458 = vmatpush1.bf16.msra.mxu0 0
        %459 = vmatprep.subr.bf16.mxu0 0
        %460 = vmatpush1.bf16.msra.mxu0 0
        %461 = vmatprep.subr.bf16.mxu0 0
        %462 = vmatpush1.bf16.msra.mxu0 %v445
        %463 = vmatprep.subr.bf16.mxu0 0
        %464 = vmatpush2.bf16.msra.mxu0 0
        %465 = vmatprep.subr.bf16.mxu0 0
        %466 = vmatpush2.bf16.msra.mxu0 0
        %467 = vmatprep.subr.bf16.mxu0 0
        %468 = vmatpush2.bf16.msra.mxu0 0
        %469 = vmatprep.subr.bf16.mxu0 0
        %470 = vmatpush2.bf16.msra.mxu0 0
        %471 = vmatprep.subr.bf16.mxu0 0
        %472 = vmatpush2.bf16.msra.mxu0 0
        %473 = vmatprep.subr.bf16.mxu0 0
        %474 = vmatpush2.bf16.msra.mxu0 0
        %475 = vmatprep.subr.bf16.mxu0 0
        %476 = vmatpush2.bf16.msra.mxu0 0
        %477 = vmatprep.subr.bf16.mxu0 0
        %478 = vmatpush2.bf16.msra.mxu0 0
        %479 = vmatprep.mubr.bf16.mxu0 0
        %480 = vmatmul.mubr.bf16.gmra.mxu0 %v442
        %v481 = vpop.f32.mrf.mxu0
        %v482 = vadd.f32 0.0, %v481
        %v483 = vpop.f32.mrf.mxu0
        %v484 = vpop.f32.mrf.mxu0
        %v485 = vpop.f32.mrf.mxu0
        %486 = vdwg.mxu0
        %v487 = vrcp.pop %v386
        %v488 = vrcp.pop %v389
        %v489 = vmul.f32 %v436, %v487
        %v490 = vmul.f32 %v482, %v488
        %491 = vst [vmem:[%s220] sm:$0xff] %v489
        %492 = vst [vmem:[%s220 + $0x8] sm:$0xff] %v490
        %s493 = sand.u32 %s119, 1
        %s494 = scalar_lea.sflag [#allocation3], %s493
        %s495 = sand.u32 %s119, 1
        %s496 = smul.addr %s495, 16
        %s497 = scalar_lea.vmem [#allocation2], %s496
        // Predicated region
        $region33: #{tpu_custom_call.1} parent=31 // pred_check
          %p498 = pneg %p129
        $region34: #{tpu_custom_call.1} parent=31 // pred_check_branch
          %500 = sbr.rel (%p498) target = $region36
        $region35: #{tpu_custom_call.1} parent=31 // pred_region
          %s501 = smul.u32 2, %s21
          %s503 = ssub.s32 256, 256
          %504 = vsyncadd %s494, %s503
          %s505 = sadd.s32 %s22, %s501
          %s506 = smul.addr %s505, 128
          %s507 = scalar_lea.hbm %s3, %s506
          %s508 = sshll.u32 %s497, 4
          %s509 = int_to_ptr.vmem [resolvable:$true] %s508
          %514 = dma.vmem_to_hbm [thread:$0]  %s509, 256, %s507, %s494, 128, 128, 8
        $region36: #{tpu_custom_call.1} parent=31 // pred_fallthru
          _
      $region32: #{tpu_custom_call.1} parent=5 // pred_fallthru
        _
      %p515 = scmp.le.s32.totalorder 2, %s12
      // Predicated region
      $region37: #{tpu_custom_call.1} parent=5 // pred_check
        %p516 = pneg %p515
      $region38: #{tpu_custom_call.1} parent=5 // pred_check_branch
        %518 = sbr.rel (%p516) target = $region40
      $region39: #{tpu_custom_call.1} parent=5 // pred_region
        %s519 = ssub.s32 %s12, 2
        // Predicated region
        $region41: #{tpu_custom_call.1} parent=39 // pred_check
          %p520 = pneg %p135
        $region42: #{tpu_custom_call.1} parent=39 // pred_check_branch
          %522 = sbr.rel (%p520) target = $region44
        $region43: #{tpu_custom_call.1} parent=39 // pred_region
          %s523 = sand.u32 %s120, 1
          %s524 = scalar_lea.sflag [#allocation3], %s523
          %s525 = sand.u32 %s120, 1
          %s526 = smul.addr %s525, 16
          %s527 = scalar_lea.vmem [#allocation2], %s526
          %528 = dma.done %s524, 256
        $region44: #{tpu_custom_call.1} parent=39 // pred_fallthru
          _
      $region40: #{tpu_custom_call.1} parent=5 // pred_fallthru
        _
    $region6: #{tpu_custom_call.1} parent=1 // loop_footer
      %s16 = sadd.s32 1, %s12
    $region7: #{tpu_custom_call.1} parent=1 // loop_footer_branch
      %11 = sbr.rel target = $region3
    $region8: #{tpu_custom_call.1} parent=1 // loop_exit
      _
    %529 = vsyncpa [#allocation3], 1
    %s530 = scalar_lea.sflag [#allocation3], 1
    %531 = vsyncpa %s530, 1

</llo_original>
